<compile_context>
chip_gen: v7x
topology: tpu7x:2x2x1
jax: 0.10.0
libtpu: 0.0.40
codegen_flags: <defaults>
</compile_context>

<pallas_src>
import jax
import jax.numpy as jnp
from jax.experimental import pallas as pl
from jax.experimental.pallas import tpu as pltpu

# ----- module hyperparameters (non-factored config, include_parent_actions=False) -----
N_ACTIONS = 4
N_LATENT = 8
N_UNITS = 32
N_HIDDEN_LAYERS = 2          # MLP: in->units, tanh, units->units, tanh, units->out
INCLUDE_PARENT_ACTIONS = False

N_INPUTS = N_LATENT + N_ACTIONS
N_OUTPUTS = N_LATENT + (N_ACTIONS if INCLUDE_PARENT_ACTIONS else 0)

# Demo batch: big enough to amortize per-call overhead and exercise the batch grid.
BATCH = 256
BLOCK_BATCH = 128

# ----- packed parameter buffer layout: one (PROWS, N_UNITS) f32 VMEM DMA -----
# Weights are stored [in, out] (transpose of torch nn.Linear.weight), biases as rows.
# Row offsets are 8-aligned so every in-kernel static slice is sublane-aligned.
ROW_W0Z = 0                                    # W0 rows for z        (8, 32)
ROW_W0A = ROW_W0Z + N_LATENT                   # W0 rows for one-hot  (4, 32)
ROW_W1 = 16                                    # W1                   (32, 32)
ROW_W2 = ROW_W1 + N_UNITS                      # W2 in cols 0:N_OUT   (32, 8)
ROW_B0 = ROW_W2 + N_UNITS                      # b0                   (1, 32)
ROW_B1 = ROW_B0 + 8                            # b1                   (1, 32)
ROW_B2 = ROW_B1 + 8                            # b2 in cols 0:N_OUT   (1, 8)
PROWS = ROW_B2 + 8                             # 104 rows x 32 lanes  (~13 KB)


def parents_net_kernel(z_ref, a_ref, u_ref, p_ref, out_ref):
    tb = z_ref.shape[0]
    z = z_ref[...]                                        # (tb, N_LATENT)
    a = a_ref[...]                                        # (tb, 1) int32

    # one_hot(a) fused in-kernel (replaces the XLA one_hot + concat glue).
    lane = jax.lax.broadcasted_iota(jnp.int32, (tb, N_ACTIONS), 1)
    a_onehot = (lane == a).astype(jnp.float32)            # (tb, N_ACTIONS)

    # Static, sublane-aligned views into the single packed parameter buffer.
    w0z = p_ref[ROW_W0Z:ROW_W0Z + N_LATENT, :]            # (8, 32)
    w0a = p_ref[ROW_W0A:ROW_W0A + N_ACTIONS, :]           # (4, 32)
    w1 = p_ref[ROW_W1:ROW_W1 + N_UNITS, :]                # (32, 32)
    w2 = p_ref[ROW_W2:ROW_W2 + N_UNITS, 0:N_OUTPUTS]      # (32, 8)
    b0 = p_ref[ROW_B0:ROW_B0 + 1, :]                      # (1, 32)
    b1 = p_ref[ROW_B1:ROW_B1 + 1, :]                      # (1, 32)
    b2 = p_ref[ROW_B2:ROW_B2 + 1, 0:N_OUTPUTS]            # (1, 8)

    # MLP (2 hidden layers, Tanh). context @ W0 == z @ W0z + one_hot @ W0a (no concat needed).
    h = jnp.tanh(jnp.dot(z, w0z, preferred_element_type=jnp.float32)
                 + jnp.dot(a_onehot, w0a, preferred_element_type=jnp.float32)
                 + b0)
    h = jnp.tanh(jnp.dot(h, w1, preferred_element_type=jnp.float32) + b1)
    logits = jnp.dot(h, w2, preferred_element_type=jnp.float32) + b2

    # sigmoid via tanh identity: sigmoid(x) = 0.5*(1 + tanh(x/2)) -> EUP, no VALU divide.
    soft = 0.5 * (jnp.tanh(0.5 * logits) + 1.0)

    # bernoulli(soft) under no_grad: threshold pre-drawn uniforms. Forward value is exactly {0,1}.
    hard = (u_ref[...] < soft).astype(jnp.float32)

    # Single lane-packed output tile: [hard | soft].
    out_ref[:, 0:N_OUTPUTS] = hard
    out_ref[:, N_OUTPUTS:2 * N_OUTPUTS] = soft


def init_params(key):
    """Deterministic PyTorch-nn.Linear-style init. Weights stored [in, out], biases [1, out]."""
    dims = [N_INPUTS] + [N_UNITS] * N_HIDDEN_LAYERS + [N_OUTPUTS]
    params = []
    for i in range(len(dims) - 1):
        fan_in, fan_out = dims[i], dims[i + 1]
        k = 1.0 / jnp.sqrt(jnp.float32(fan_in))
        key, kw, kb = jax.random.split(key, 3)
        w = jax.random.uniform(kw, (fan_in, fan_out), jnp.float32, -k, k)
        b = jax.random.uniform(kb, (1, fan_out), jnp.float32, -k, k)
        params += [w, b]
    return tuple(params)


def pack_params(params):
    """Pack all weights/biases into one lane-dense (PROWS, N_UNITS) f32 buffer (done once at init)."""
    w0, b0, w1, b1, w2, b2 = params
    p = jnp.zeros((PROWS, N_UNITS), jnp.float32)
    p = p.at[ROW_W0Z:ROW_W0Z + N_LATENT, :].set(w0[:N_LATENT])
    p = p.at[ROW_W0A:ROW_W0A + N_ACTIONS, :].set(w0[N_LATENT:])
    p = p.at[ROW_W1:ROW_W1 + N_UNITS, :].set(w1)
    p = p.at[ROW_W2:ROW_W2 + N_UNITS, 0:N_OUTPUTS].set(w2)
    p = p.at[ROW_B0, :].set(b0[0])
    p = p.at[ROW_B1, :].set(b1[0])
    p = p.at[ROW_B2, 0:N_OUTPUTS].set(b2[0])
    return p


def parents_net_forward(z, a, packed_params, key, block_batch=BLOCK_BATCH):
    batch = z.shape[0]
    tb = block_batch if batch >= block_batch else max(8, -(-batch // 8) * 8)
    padded = -(-batch // tb) * tb
    n_blocks = padded // tb

    # Pre-drawn uniforms for the bernoulli draw (distinct per row/block by construction).
    u = jax.random.uniform(key, (padded, N_OUTPUTS), jnp.float32)
    zp = z if padded == batch else jnp.pad(z, ((0, padded - batch), (0, 0)))
    ap = a if padded == batch else jnp.pad(a, (0, padded - batch))
    a2 = ap.astype(jnp.int32).reshape(padded, 1)

    packed_out = pl.pallas_call(
        parents_net_kernel,
        out_shape=jax.ShapeDtypeStruct((padded, 2 * N_OUTPUTS), jnp.float32),
        grid=(n_blocks,),
        in_specs=[
            pl.BlockSpec((tb, N_LATENT), lambda i: (i, 0)),
            pl.BlockSpec((tb, 1), lambda i: (i, 0)),
            pl.BlockSpec((tb, N_OUTPUTS), lambda i: (i, 0)),
            # constant block index -> weights stay VMEM-resident across the whole grid
            pl.BlockSpec((PROWS, N_UNITS), lambda i: (0, 0)),
        ],
        out_specs=pl.BlockSpec((tb, 2 * N_OUTPUTS), lambda i: (i, 0)),
        compiler_params=pltpu.CompilerParams(dimension_semantics=("parallel",)),
    )(zp, a2, u, packed_params)

    hard = packed_out[:batch, 0:N_OUTPUTS]
    soft = packed_out[:batch, N_OUTPUTS:2 * N_OUTPUTS]
    # Straight-through estimator: forward value is exactly `hard` (soft - sg(soft) == 0.0 exactly).
    # TODO(synk): wrap the pallas_call in jax.custom_vjp if gradients are needed (pallas_call is not
    #             auto-differentiated here, so the detach trick alone does not give a backward pass).
    parents = hard + (soft - jax.lax.stop_gradient(soft))
    return parents, soft


def reference_soft(z, a, params):
    """Pure-JAX reference for the deterministic part (soft_decisions)."""
    a_onehot = jax.nn.one_hot(a, N_ACTIONS, dtype=z.dtype)
    x = jnp.concatenate([z, a_onehot], axis=-1)
    w0, b0, w1, b1, w2, b2 = params
    h = jnp.tanh(x @ w0 + b0)
    h = jnp.tanh(h @ w1 + b1)
    logits = h @ w2 + b2
    return jax.nn.sigmoid(logits)


if __name__ == "__main__":
    key = jax.random.PRNGKey(0)
    kz, ka, kp, ku = jax.random.split(key, 4)

    z = jax.random.normal(kz, (BATCH, N_LATENT), dtype=jnp.float32)
    a = jax.random.randint(ka, (BATCH,), 0, N_ACTIONS, dtype=jnp.int32)
    params = init_params(kp)
    packed = pack_params(params)            # built once at init (single param DMA per call)

    parents, soft = parents_net_forward(z, a, packed, ku)
    parents = jax.block_until_ready(parents)
    soft = jax.block_until_ready(soft)

    # Verify deterministic part against pure-JAX reference.
    soft_ref = reference_soft(z, a, params)
    assert parents.shape == (BATCH, N_OUTPUTS)
    assert soft.shape == (BATCH, N_OUTPUTS)
    assert jnp.allclose(soft, soft_ref, atol=1e-4, rtol=1e-4), "soft mismatch"
    # Straight-through forward value must be exactly the hard {0,1} samples.
    assert bool(jnp.all((parents == 0.0) | (parents == 1.0))), "parents not hard"

    print("KERNEL_OK")
</pallas_src>

<mosaic_0001>
module attributes {stable_mosaic.version = 11 : i64} {
  func.func @parents_net_kernel(%arg0: i32, %arg1: memref<128x8xf32, #tpu.memory_space<vmem>>, %arg2: memref<128x1xi32, #tpu.memory_space<vmem>>, %arg3: memref<128x8xf32, #tpu.memory_space<vmem>>, %arg4: memref<104x32xf32, #tpu.memory_space<vmem>>, %arg5: memref<128x16xf32, #tpu.memory_space<vmem>>) attributes {dimension_semantics = [#tpu.dimension_semantics<parallel>], iteration_bounds = array<i64: 2>, scalar_prefetch = 0 : i64, scratch_operands = 0 : i64, tpu.core_type = #tpu.core_type<tc>, window_params = [{transform_indices = @transform_0, window_bounds = array<i64: 128, 8>}, {transform_indices = @transform_1, window_bounds = array<i64: 128, 1>}, {transform_indices = @transform_2, window_bounds = array<i64: 128, 8>}, {pipeline_mode = #tpu.pipeline_mode<synchronous>, transform_indices = @transform_3, window_bounds = array<i64: 104, 32>}, {transform_indices = @transform_4, window_bounds = array<i64: 128, 16>}]} {
    %c0 = arith.constant 0 : index
    %c0_0 = arith.constant 0 : index
    %0 = vector.load %arg1[%c0, %c0_0] : memref<128x8xf32, #tpu.memory_space<vmem>>, vector<128x8xf32>
    %c0_1 = arith.constant 0 : index
    %c0_2 = arith.constant 0 : index
    %1 = vector.load %arg2[%c0_1, %c0_2] : memref<128x1xi32, #tpu.memory_space<vmem>>, vector<128x1xi32>
    %2 = tpu.iota {dimensions = array<i32: 1>} : vector<128x4xi32>
    %3 = vector.broadcast %1 : vector<128x1xi32> to vector<128x4xi32>
    %4 = arith.cmpi eq, %2, %3 : vector<128x4xi32>
    %5 = arith.extui %4 : vector<128x4xi1> to vector<128x4xi32>
    %6 = arith.sitofp %5 : vector<128x4xi32> to vector<128x4xf32>
    %c0_3 = arith.constant 0 : index
    %c0_4 = arith.constant 0 : index
    %7 = vector.load %arg4[%c0_3, %c0_4] : memref<104x32xf32, #tpu.memory_space<vmem>>, vector<8x32xf32>
    %c8 = arith.constant 8 : index
    %c0_5 = arith.constant 0 : index
    %8 = vector.load %arg4[%c8, %c0_5] : memref<104x32xf32, #tpu.memory_space<vmem>>, vector<4x32xf32>
    %c16 = arith.constant 16 : index
    %c0_6 = arith.constant 0 : index
    %9 = vector.load %arg4[%c16, %c0_6] : memref<104x32xf32, #tpu.memory_space<vmem>>, vector<32x32xf32>
    %c48 = arith.constant 48 : index
    %c0_7 = arith.constant 0 : index
    %10 = vector.load %arg4[%c48, %c0_7] : memref<104x32xf32, #tpu.memory_space<vmem>>, vector<32x8xf32>
    %c80 = arith.constant 80 : index
    %c0_8 = arith.constant 0 : index
    %11 = vector.load %arg4[%c80, %c0_8] : memref<104x32xf32, #tpu.memory_space<vmem>>, vector<1x32xf32>
    %c88 = arith.constant 88 : index
    %c0_9 = arith.constant 0 : index
    %12 = vector.load %arg4[%c88, %c0_9] : memref<104x32xf32, #tpu.memory_space<vmem>>, vector<1x32xf32>
    %c96 = arith.constant 96 : index
    %c0_10 = arith.constant 0 : index
    %13 = vector.load %arg4[%c96, %c0_10] : memref<104x32xf32, #tpu.memory_space<vmem>>, vector<1x8xf32>
    %cst = arith.constant dense<0.000000e+00> : vector<128x32xf32>
    %14 = tpu.matmul %0, %7, %cst {dimension_numbers = #tpu.dot_dimension_numbers<[1], [0], [0], [1], [0, 0, 1, 1], [], []>} : vector<128x8xf32>, vector<8x32xf32>, vector<128x32xf32> -> vector<128x32xf32>
    %cst_11 = arith.constant dense<0.000000e+00> : vector<128x32xf32>
    %15 = tpu.matmul %6, %8, %cst_11 {dimension_numbers = #tpu.dot_dimension_numbers<[1], [0], [0], [1], [0, 0, 1, 1], [], []>} : vector<128x4xf32>, vector<4x32xf32>, vector<128x32xf32> -> vector<128x32xf32>
    %16 = arith.addf %14, %15 : vector<128x32xf32>
    %17 = vector.broadcast %11 : vector<1x32xf32> to vector<128x32xf32>
    %18 = arith.addf %16, %17 : vector<128x32xf32>
    %19 = math.tanh %18 : vector<128x32xf32>
    %cst_12 = arith.constant dense<0.000000e+00> : vector<128x32xf32>
    %20 = tpu.matmul %19, %9, %cst_12 {dimension_numbers = #tpu.dot_dimension_numbers<[1], [0], [0], [1], [0, 0, 1, 1], [], []>} : vector<128x32xf32>, vector<32x32xf32>, vector<128x32xf32> -> vector<128x32xf32>
    %21 = vector.broadcast %12 : vector<1x32xf32> to vector<128x32xf32>
    %22 = arith.addf %20, %21 : vector<128x32xf32>
    %23 = math.tanh %22 : vector<128x32xf32>
    %cst_13 = arith.constant dense<0.000000e+00> : vector<128x8xf32>
    %24 = tpu.matmul %23, %10, %cst_13 {dimension_numbers = #tpu.dot_dimension_numbers<[1], [0], [0], [1], [0, 0, 1, 1], [], []>} : vector<128x32xf32>, vector<32x8xf32>, vector<128x8xf32> -> vector<128x8xf32>
    %25 = vector.broadcast %13 : vector<1x8xf32> to vector<128x8xf32>
    %26 = arith.addf %24, %25 : vector<128x8xf32>
    %cst_14 = arith.constant 5.000000e-01 : f32
    %27 = vector.broadcast %cst_14 : f32 to vector<128x8xf32>
    %28 = arith.mulf %27, %26 : vector<128x8xf32>
    %29 = math.tanh %28 : vector<128x8xf32>
    %cst_15 = arith.constant 1.000000e+00 : f32
    %30 = vector.broadcast %cst_15 : f32 to vector<128x8xf32>
    %31 = arith.addf %29, %30 : vector<128x8xf32>
    %cst_16 = arith.constant 5.000000e-01 : f32
    %32 = vector.broadcast %cst_16 : f32 to vector<128x8xf32>
    %33 = arith.mulf %32, %31 : vector<128x8xf32>
    %c0_17 = arith.constant 0 : index
    %c0_18 = arith.constant 0 : index
    %34 = vector.load %arg3[%c0_17, %c0_18] : memref<128x8xf32, #tpu.memory_space<vmem>>, vector<128x8xf32>
    %35 = arith.cmpf olt, %34, %33 : vector<128x8xf32>
    %36 = arith.extui %35 : vector<128x8xi1> to vector<128x8xi32>
    %37 = arith.sitofp %36 : vector<128x8xi32> to vector<128x8xf32>
    %c0_19 = arith.constant 0 : index
    %c0_20 = arith.constant 0 : index
    %38 = vector.load %arg5[%c0_19, %c0_20] : memref<128x16xf32, #tpu.memory_space<vmem>>, vector<128x8xf32>
    tpu.vector_store %arg5[%c0_19, %c0_20], %37 {strides = array<i32>} : memref<128x16xf32, #tpu.memory_space<vmem>>, vector<128x8xf32>,
    %c0_21 = arith.constant 0 : index
    %c8_22 = arith.constant 8 : index
    %39 = vector.load %arg5[%c0_21, %c8_22] : memref<128x16xf32, #tpu.memory_space<vmem>>, vector<128x8xf32>
    tpu.vector_store %arg5[%c0_21, %c8_22], %33 {strides = array<i32>} : memref<128x16xf32, #tpu.memory_space<vmem>>, vector<128x8xf32>,
    return
  }
  func.func @transform_0(%arg0: i32) -> (i32, i32) {
    %c0_i32 = arith.constant 0 : i32
    %c0_i32_0 = arith.constant 0 : i32
    return %arg0, %c0_i32 : i32, i32
  }
  func.func @transform_1(%arg0: i32) -> (i32, i32) {
    %c0_i32 = arith.constant 0 : i32
    %c0_i32_0 = arith.constant 0 : i32
    return %arg0, %c0_i32 : i32, i32
  }
  func.func @transform_2(%arg0: i32) -> (i32, i32) {
    %c0_i32 = arith.constant 0 : i32
    %c0_i32_0 = arith.constant 0 : i32
    return %arg0, %c0_i32 : i32, i32
  }
  func.func @transform_3(%arg0: i32) -> (i32, i32) {
    %c0_i32 = arith.constant 0 : i32
    %c0_i32_0 = arith.constant 0 : i32
    %c0_i32_1 = arith.constant 0 : i32
    return %c0_i32, %c0_i32_0 : i32, i32
  }
  func.func @transform_4(%arg0: i32) -> (i32, i32) {
    %c0_i32 = arith.constant 0 : i32
    %c0_i32_0 = arith.constant 0 : i32
    return %arg0, %c0_i32 : i32, i32
  }
}

</mosaic_0001>

<llo_original>
// kernel: tpu_custom_call.1
$region0: #{tpu_custom_call.1}
  #allocation0 [shape = 'u32[]', space=smem, size = 0x4, offset = 0x4, fixed_abs, tag = 'smem constant byte address 0x4 - core index']
  #allocation1 [shape = 'u32[144,128]{1,0:T(1,128)}', space=vmem, size = 0x12000, scoped, tag = 'internal scratch']
  %s0 = inlined_call_operand.vmem [shape: f32[256,8], index: 0, kind: input, shape index: {}]
  %s1 = inlined_call_operand.vmem [shape: s32[256,1], index: 1, kind: input, shape index: {}]
  %s2 = inlined_call_operand.vmem [shape: f32[256,8], index: 2, kind: input, shape index: {}]
  %s3 = inlined_call_operand.vmem [shape: f32[104,32], index: 3, kind: input, shape index: {}]
  %s4 = inlined_call_operand.vmem [shape: f32[256,16], index: 4, kind: output, shape index: {}]
  %s5 = sld [smem:[#allocation0]]
  $region49: #{tpu_custom_call.1} parent=0
    _
  %s7 = ssub.s32 1, %s5
  %s8 = scalar_select 0, %s7, %s5
  loop: start=0, step=1, limit=4
  $region2: #{tpu_custom_call.1} parent=0 // loop_pre_header
    _
  $region3: #{tpu_custom_call.1} parent=0 // loop_header
    %s10 = sphi 0, %s14
    %p11 = scmp.ge.s32.totalorder %s10, 4
    %s20 = sphi 0, %s22
    %s23 = sphi 0, %s20
    %s24 = sphi 0, %s23
    %s40 = sphi 0, %s24
    %s46 = sphi 0, %s48
    %s49 = sphi 0, %s46
    %s50 = sphi 0, %s49
    %s66 = sphi 0, %s50
    %s72 = sphi 0, %s74
    %s75 = sphi 0, %s72
    %s76 = sphi 0, %s75
    %s92 = sphi 0, %s76
    %s96 = sphi 0, %s96
    %s98 = sphi 0, %s96
    %s99 = sphi 0, %s98
    %s113 = sphi 0, %s99
    %s119 = sphi 0, %s121
    %s122 = sphi 0, %s119
    %s123 = sphi 0, %s122
    %s139 = sphi 0, %s123
  $region4: #{tpu_custom_call.1} parent=0 // loop_header_branch
    %13 = sbr.rel (%p11) target = $region8
  $region5: #{tpu_custom_call.1} parent=0 // loop_body
    %s15 = ssub.s32 %s10, 1
    %s16 = ssub.s32 %s10, 2
    %s17 = sadd.s32 %s10, 1
    %s18 = ssub.s32 %s10, %s17
    %p19 = scmp.eq.s32.totalorder %s18, 0
    %s21 = sadd.s32 %s20, 1
    %s22 = scalar_select %p19, %s20, %s21
    %p25 = pneg %p19
    %p26 = scmp.eq.s32.totalorder %s10, 1
    %p27 = por %p25, %p26
    %p28 = scmp.ne.s32.totalorder %s20, %s23
    %p29 = scmp.eq.s32.totalorder %s10, 0
    %p30 = por %p28, %p29
    %p31 = scmp.ne.s32.totalorder %s20, %s23
    %p32 = scmp.eq.s32.totalorder %s15, 1
    %p33 = por %p31, %p32
    %p34 = scmp.ne.s32.totalorder %s23, %s24
    %p35 = scmp.eq.s32.totalorder %s15, 0
    %p36 = por %p34, %p35
    %p37 = scmp.ne.s32.totalorder %s23, %s24
    %p38 = scmp.eq.s32.totalorder %s16, 1
    %p39 = por %p37, %p38
    %p41 = scmp.ne.s32.totalorder %s24, %s40
    %p42 = scmp.eq.s32.totalorder %s16, 0
    %p43 = por %p41, %p42
    %s44 = ssub.s32 %s10, %s17
    %p45 = scmp.eq.s32.totalorder %s44, 0
    %s47 = sadd.s32 %s46, 1
    %s48 = scalar_select %p45, %s46, %s47
    %p51 = pneg %p45
    %p52 = scmp.eq.s32.totalorder %s10, 1
    %p53 = por %p51, %p52
    %p54 = scmp.ne.s32.totalorder %s46, %s49
    %p55 = scmp.eq.s32.totalorder %s10, 0
    %p56 = por %p54, %p55
    %p57 = scmp.ne.s32.totalorder %s46, %s49
    %p58 = scmp.eq.s32.totalorder %s15, 1
    %p59 = por %p57, %p58
    %p60 = scmp.ne.s32.totalorder %s49, %s50
    %p61 = scmp.eq.s32.totalorder %s15, 0
    %p62 = por %p60, %p61
    %p63 = scmp.ne.s32.totalorder %s49, %s50
    %p64 = scmp.eq.s32.totalorder %s16, 1
    %p65 = por %p63, %p64
    %p67 = scmp.ne.s32.totalorder %s50, %s66
    %p68 = scmp.eq.s32.totalorder %s16, 0
    %p69 = por %p67, %p68
    %s70 = ssub.s32 %s10, %s17
    %p71 = scmp.eq.s32.totalorder %s70, 0
    %s73 = sadd.s32 %s72, 1
    %s74 = scalar_select %p71, %s72, %s73
    %p77 = pneg %p71
    %p78 = scmp.eq.s32.totalorder %s10, 1
    %p79 = por %p77, %p78
    %p80 = scmp.ne.s32.totalorder %s72, %s75
    %p81 = scmp.eq.s32.totalorder %s10, 0
    %p82 = por %p80, %p81
    %p83 = scmp.ne.s32.totalorder %s72, %s75
    %p84 = scmp.eq.s32.totalorder %s15, 1
    %p85 = por %p83, %p84
    %p86 = scmp.ne.s32.totalorder %s75, %s76
    %p87 = scmp.eq.s32.totalorder %s15, 0
    %p88 = por %p86, %p87
    %p89 = scmp.ne.s32.totalorder %s75, %s76
    %p90 = scmp.eq.s32.totalorder %s16, 1
    %p91 = por %p89, %p90
    %p93 = scmp.ne.s32.totalorder %s76, %s92
    %p94 = scmp.eq.s32.totalorder %s16, 0
    %p95 = por %p93, %p94
    %s97 = sadd.s32 %s96, 1
    %p100 = scmp.eq.s32.totalorder %s10, 1
    %p101 = scmp.ne.s32.totalorder %s96, %s98
    %p102 = scmp.eq.s32.totalorder %s10, 0
    %p103 = por %p101, %p102
    %p104 = scmp.ne.s32.totalorder %s96, %s98
    %p105 = scmp.eq.s32.totalorder %s15, 1
    %p106 = por %p104, %p105
    %p107 = scmp.ne.s32.totalorder %s98, %s99
    %p108 = scmp.eq.s32.totalorder %s15, 0
    %p109 = por %p107, %p108
    %p110 = scmp.ne.s32.totalorder %s98, %s99
    %p111 = scmp.eq.s32.totalorder %s16, 1
    %p112 = por %p110, %p111
    %p114 = scmp.ne.s32.totalorder %s99, %s113
    %p115 = scmp.eq.s32.totalorder %s16, 0
    %p116 = por %p114, %p115
    %s117 = ssub.s32 %s10, %s17
    %p118 = scmp.eq.s32.totalorder %s117, 0
    %s120 = sadd.s32 %s119, 1
    %s121 = scalar_select %p118, %s119, %s120
    %p124 = pneg %p118
    %p125 = scmp.eq.s32.totalorder %s10, 1
    %p126 = por %p124, %p125
    %p127 = scmp.ne.s32.totalorder %s119, %s122
    %p128 = scmp.eq.s32.totalorder %s10, 0
    %p129 = por %p127, %p128
    %p130 = scmp.ne.s32.totalorder %s119, %s122
    %p131 = scmp.eq.s32.totalorder %s15, 1
    %p132 = por %p130, %p131
    %p133 = scmp.ne.s32.totalorder %s122, %s123
    %p134 = scmp.eq.s32.totalorder %s15, 0
    %p135 = por %p133, %p134
    %p136 = scmp.ne.s32.totalorder %s122, %s123
    %p137 = scmp.eq.s32.totalorder %s16, 1
    %p138 = por %p136, %p137
    %p140 = scmp.ne.s32.totalorder %s123, %s139
    %p141 = scmp.eq.s32.totalorder %s16, 0
    %p142 = por %p140, %p141
    %p143 = scmp.le.s32.totalorder 1, %s10
    %p144 = scmp.lt.s32.totalorder %s10, 3
    %p145 = pnand %p143, %p144
    %p146 = pneg %p145
    // Predicated region
    $region9: #{tpu_custom_call.1} parent=5 // pred_check
      _
    $region10: #{tpu_custom_call.1} parent=5 // pred_check_branch
      %148 = sbr.rel (%p145) target = $region12
    $region11: #{tpu_custom_call.1} parent=5 // pred_region
      %s149 = ssub.s32 %s10, 1
      // Predicated region
      $region13: #{tpu_custom_call.1} parent=11 // pred_check
        %p150 = pneg %p109
      $region14: #{tpu_custom_call.1} parent=11 // pred_check_branch
        %152 = sbr.rel (%p150) target = $region16
      $region15: #{tpu_custom_call.1} parent=11 // pred_region
        _
      $region16: #{tpu_custom_call.1} parent=11 // pred_fallthru
        _
    $region12: #{tpu_custom_call.1} parent=5 // pred_fallthru
      _
    %p153 = scmp.lt.s32.totalorder %s10, 2
    // Predicated region
    $region17: #{tpu_custom_call.1} parent=5 // pred_check
      %p154 = pneg %p153
    $region18: #{tpu_custom_call.1} parent=5 // pred_check_branch
      %156 = sbr.rel (%p154) target = $region20
    $region19: #{tpu_custom_call.1} parent=5 // pred_region
      // Predicated region
      $region21: #{tpu_custom_call.1} parent=19 // pred_check
        %p157 = pneg %p30
      $region22: #{tpu_custom_call.1} parent=19 // pred_check_branch
        %159 = sbr.rel (%p157) target = $region24
      $region23: #{tpu_custom_call.1} parent=19 // pred_region
        %s160 = smul.u32 16, %s10
        %p161 = scmp.lt.s32.totalorder %s160, 31
        %s162 = scalar_select %p161, %s160, 31
        %s163 = smul.addr %s162, 8
        %s164 = scalar_lea.vmem %s0, %s163
        %s165 = smul.u32 16, %s10
      $region24: #{tpu_custom_call.1} parent=19 // pred_fallthru
        _
      // Predicated region
      $region25: #{tpu_custom_call.1} parent=19 // pred_check
        %p166 = pneg %p56
      $region26: #{tpu_custom_call.1} parent=19 // pred_check_branch
        %168 = sbr.rel (%p166) target = $region28
      $region27: #{tpu_custom_call.1} parent=19 // pred_region
        %s169 = smul.u32 16, %s10
        %p170 = scmp.lt.s32.totalorder %s169, 31
        %s171 = scalar_select %p170, %s169, 31
        %s172 = smul.addr %s171, 8
        %s173 = scalar_lea.vmem %s1, %s172
        %s174 = smul.u32 16, %s10
      $region28: #{tpu_custom_call.1} parent=19 // pred_fallthru
        _
      // Predicated region
      $region29: #{tpu_custom_call.1} parent=19 // pred_check
        %p175 = pneg %p82
      $region30: #{tpu_custom_call.1} parent=19 // pred_check_branch
        %177 = sbr.rel (%p175) target = $region32
      $region31: #{tpu_custom_call.1} parent=19 // pred_region
        %s178 = smul.u32 16, %s10
        %p179 = scmp.lt.s32.totalorder %s178, 31
        %s180 = scalar_select %p179, %s178, 31
        %s181 = smul.addr %s180, 8
        %s182 = scalar_lea.vmem %s2, %s181
        %s183 = smul.u32 16, %s10
      $region32: #{tpu_custom_call.1} parent=19 // pred_fallthru
        _
    $region20: #{tpu_custom_call.1} parent=5 // pred_fallthru
      _
    %p184 = scmp.le.s32.totalorder 1, %s10
    %p185 = scmp.lt.s32.totalorder %s10, 3
    %p186 = pnand %p184, %p185
    %p187 = pneg %p186
    // Predicated region
    $region33: #{tpu_custom_call.1} parent=5 // pred_check
      _
    $region34: #{tpu_custom_call.1} parent=5 // pred_check_branch
      %189 = sbr.rel (%p186) target = $region36
    $region35: #{tpu_custom_call.1} parent=5 // pred_region
      %s190 = ssub.s32 %s10, 1
      %s191 = smul.u32 16, %s15
      %p192 = scmp.lt.s32.totalorder %s191, 31
      %s193 = scalar_select %p192, %s191, 31
      %s194 = smul.addr %s193, 8
      %s195 = scalar_lea.vmem %s0, %s194
      %p196 = pneg %p36
      %p197 = pneg %p33
      %s198 = smul.u32 16, %s15
      %p199 = scmp.lt.s32.totalorder %s198, 31
      %s200 = scalar_select %p199, %s198, 31
      %s201 = smul.addr %s200, 8
      %s202 = scalar_lea.vmem %s1, %s201
      %p203 = pneg %p62
      %p204 = pneg %p59
      %s205 = smul.u32 16, %s15
      %p206 = scmp.lt.s32.totalorder %s205, 31
      %s207 = scalar_select %p206, %s205, 31
      %s208 = smul.addr %s207, 8
      %s209 = scalar_lea.vmem %s2, %s208
      %p210 = pneg %p88
      %p211 = pneg %p85
      %p212 = pneg %p109
      %p213 = pneg %p106
      %p214 = pneg %p135
      %p215 = pneg %p132
      %s216 = smul.u32 16, %s15
      %p217 = scmp.lt.s32.totalorder %s216, 31
      %s218 = scalar_select %p217, %s216, 31
      %s219 = smul.addr %s218, 8
      %s220 = scalar_lea.vmem %s4, %s219
      %s221 = smul.u32 16, %s15
      %p222 = scmp.lt.s32.totalorder %s221, 31
      %s223 = scalar_select %p222, %s221, 31
      %s224 = smul.addr %s223, 8
      %s225 = scalar_lea.vmem %s0, %s224
      %s226 = smul.u32 16, %s15
      %s227 = smul.u32 16, %s15
      %p228 = scmp.lt.s32.totalorder %s227, 31
      %s229 = scalar_select %p228, %s227, 31
      %s230 = smul.addr %s229, 8
      %s231 = scalar_lea.vmem %s1, %s230
      %s232 = smul.u32 16, %s15
      %s233 = smul.u32 16, %s15
      %p234 = scmp.lt.s32.totalorder %s233, 31
      %s235 = scalar_select %p234, %s233, 31
      %s236 = smul.addr %s235, 8
      %s237 = scalar_lea.vmem %s2, %s236
      %s238 = smul.u32 16, %s15
      %s239 = smul.u32 16, %s15
      %p240 = scmp.lt.s32.totalorder %s239, 31
      %s241 = scalar_select %p240, %s239, 31
      %s242 = smul.addr %s241, 8
      %s243 = scalar_lea.vmem %s4, %s242
      %s244 = smul.u32 16, %s15
      %v245 = vld [vmem:[%s225] sm:$0xff]
      %v246 = vld [vmem:[%s225 + $0x8] sm:$0xff]
      %v247 = vld [vmem:[%s225 + $0x10] sm:$0xff]
      %v248 = vld [vmem:[%s225 + $0x18] sm:$0xff]
      %v249 = vld [vmem:[%s225 + $0x20] sm:$0xff]
      %v250 = vld [vmem:[%s225 + $0x28] sm:$0xff]
      %v251 = vld [vmem:[%s225 + $0x30] sm:$0xff]
      %v252 = vld [vmem:[%s225 + $0x38] sm:$0xff]
      %v253 = vld [vmem:[%s225 + $0x40] sm:$0xff]
      %v254 = vld [vmem:[%s225 + $0x48] sm:$0xff]
      %v255 = vld [vmem:[%s225 + $0x50] sm:$0xff]
      %v256 = vld [vmem:[%s225 + $0x58] sm:$0xff]
      %v257 = vld [vmem:[%s225 + $0x60] sm:$0xff]
      %v258 = vld [vmem:[%s225 + $0x68] sm:$0xff]
      %v259 = vld [vmem:[%s225 + $0x70] sm:$0xff]
      %v260 = vld [vmem:[%s225 + $0x78] sm:$0xff]
      %v261 = vld [vmem:[%s231] sm:$0xff]
      %v262 = vld [vmem:[%s231 + $0x8] sm:$0xff]
      %v263 = vld [vmem:[%s231 + $0x10] sm:$0xff]
      %v264 = vld [vmem:[%s231 + $0x18] sm:$0xff]
      %v265 = vld [vmem:[%s231 + $0x20] sm:$0xff]
      %v266 = vld [vmem:[%s231 + $0x28] sm:$0xff]
      %v267 = vld [vmem:[%s231 + $0x30] sm:$0xff]
      %v268 = vld [vmem:[%s231 + $0x38] sm:$0xff]
      %v269 = vld [vmem:[%s231 + $0x40] sm:$0xff]
      %v270 = vld [vmem:[%s231 + $0x48] sm:$0xff]
      %v271 = vld [vmem:[%s231 + $0x50] sm:$0xff]
      %v272 = vld [vmem:[%s231 + $0x58] sm:$0xff]
      %v273 = vld [vmem:[%s231 + $0x60] sm:$0xff]
      %v274 = vld [vmem:[%s231 + $0x68] sm:$0xff]
      %v275 = vld [vmem:[%s231 + $0x70] sm:$0xff]
      %v276 = vld [vmem:[%s231 + $0x78] sm:$0xff]
      %v277 = vlaneseq
      %v278 = vand.u32 %v277, 127
      %279 = vset.pattern.permute.xlu0 0
      %280 = vperm.xlu0 %279, %v261
      %v281 = vpop.permute.xlu0 %280
      %282 = vset.pattern.permute.xlu0 0
      %283 = vperm.xlu0 %282, %v262
      %v284 = vpop.permute.xlu0 %283
      %285 = vset.pattern.permute.xlu0 0
      %286 = vperm.xlu0 %285, %v263
      %v287 = vpop.permute.xlu0 %286
      %288 = vset.pattern.permute.xlu0 0
      %289 = vperm.xlu0 %288, %v264
      %v290 = vpop.permute.xlu0 %289
      %291 = vset.pattern.permute.xlu0 0
      %292 = vperm.xlu0 %291, %v265
      %v293 = vpop.permute.xlu0 %292
      %294 = vset.pattern.permute.xlu0 0
      %295 = vperm.xlu0 %294, %v266
      %v296 = vpop.permute.xlu0 %295
      %297 = vset.pattern.permute.xlu0 0
      %298 = vperm.xlu0 %297, %v267
      %v299 = vpop.permute.xlu0 %298
      %300 = vset.pattern.permute.xlu0 0
      %301 = vperm.xlu0 %300, %v268
      %v302 = vpop.permute.xlu0 %301
      %303 = vset.pattern.permute.xlu0 0
      %304 = vperm.xlu0 %303, %v269
      %v305 = vpop.permute.xlu0 %304
      %306 = vset.pattern.permute.xlu0 0
      %307 = vperm.xlu0 %306, %v270
      %v308 = vpop.permute.xlu0 %307
      %309 = vset.pattern.permute.xlu0 0
      %310 = vperm.xlu0 %309, %v271
      %v311 = vpop.permute.xlu0 %310
      %312 = vset.pattern.permute.xlu0 0
      %313 = vperm.xlu0 %312, %v272
      %v314 = vpop.permute.xlu0 %313
      %315 = vset.pattern.permute.xlu0 0
      %316 = vperm.xlu0 %315, %v273
      %v317 = vpop.permute.xlu0 %316
      %318 = vset.pattern.permute.xlu0 0
      %319 = vperm.xlu0 %318, %v274
      %v320 = vpop.permute.xlu0 %319
      %321 = vset.pattern.permute.xlu0 0
      %322 = vperm.xlu0 %321, %v275
      %v323 = vpop.permute.xlu0 %322
      %324 = vset.pattern.permute.xlu0 0
      %325 = vperm.xlu0 %324, %v276
      %v326 = vpop.permute.xlu0 %325
      %vm327 = vcmp.eq.s32.totalorder %v278, %v281
      %vm328 = vcmp.eq.s32.totalorder %v278, %v284
      %vm329 = vcmp.eq.s32.totalorder %v278, %v287
      %vm330 = vcmp.eq.s32.totalorder %v278, %v290
      %vm331 = vcmp.eq.s32.totalorder %v278, %v293
      %vm332 = vcmp.eq.s32.totalorder %v278, %v296
      %vm333 = vcmp.eq.s32.totalorder %v278, %v299
      %vm334 = vcmp.eq.s32.totalorder %v278, %v302
      %vm335 = vcmp.eq.s32.totalorder %v278, %v305
      %vm336 = vcmp.eq.s32.totalorder %v278, %v308
      %vm337 = vcmp.eq.s32.totalorder %v278, %v311
      %vm338 = vcmp.eq.s32.totalorder %v278, %v314
      %vm339 = vcmp.eq.s32.totalorder %v278, %v317
      %vm340 = vcmp.eq.s32.totalorder %v278, %v320
      %vm341 = vcmp.eq.s32.totalorder %v278, %v323
      %vm342 = vcmp.eq.s32.totalorder %v278, %v326
      %v343 = vsel %vm327, 1, 0
      %v344 = vsel %vm328, 1, 0
      %v345 = vsel %vm329, 1, 0
      %v346 = vsel %vm330, 1, 0
      %v347 = vsel %vm331, 1, 0
      %v348 = vsel %vm332, 1, 0
      %v349 = vsel %vm333, 1, 0
      %v350 = vsel %vm334, 1, 0
      %v351 = vsel %vm335, 1, 0
      %v352 = vsel %vm336, 1, 0
      %v353 = vsel %vm337, 1, 0
      %v354 = vsel %vm338, 1, 0
      %v355 = vsel %vm339, 1, 0
      %v356 = vsel %vm340, 1, 0
      %v357 = vsel %vm341, 1, 0
      %v358 = vsel %vm342, 1, 0
      %v359 = vcvt.s32.f32 %v343
      %v360 = vcvt.s32.f32 %v344
      %v361 = vcvt.s32.f32 %v345
      %v362 = vcvt.s32.f32 %v346
      %v363 = vcvt.s32.f32 %v347
      %v364 = vcvt.s32.f32 %v348
      %v365 = vcvt.s32.f32 %v349
      %v366 = vcvt.s32.f32 %v350
      %v367 = vcvt.s32.f32 %v351
      %v368 = vcvt.s32.f32 %v352
      %v369 = vcvt.s32.f32 %v353
      %v370 = vcvt.s32.f32 %v354
      %v371 = vcvt.s32.f32 %v355
      %v372 = vcvt.s32.f32 %v356
      %v373 = vcvt.s32.f32 %v357
      %v374 = vcvt.s32.f32 %v358
      %v375 = vld [vmem:[%s3] sm:$0xff]
      %v376 = vld [vmem:[%s3 + $0x8] sm:$0xf]
      %v377 = vld [vmem:[%s3 + $0x10] sm:$0xff]
      %v378 = vld [vmem:[%s3 + $0x18] sm:$0xff]
      %v379 = vld [vmem:[%s3 + $0x20] sm:$0xff]
      %v380 = vld [vmem:[%s3 + $0x28] sm:$0xff]
      %v381 = vld [vmem:[%s3 + $0x30] sm:$0xff]
      %v382 = vld [vmem:[%s3 + $0x38] sm:$0xff]
      %v383 = vld [vmem:[%s3 + $0x40] sm:$0xff]
      %v384 = vld [vmem:[%s3 + $0x48] sm:$0xff]
      %v385 = vld [vmem:[%s3 + $0x50] sm:$0x1]
      %v386 = vld [vmem:[%s3 + $0x58] sm:$0x1]
      %v387 = vld [vmem:[%s3 + $0x60] sm:$0x1]
      %vm388 = vcmask 31744
      %v390 = vsel %vm388, %v359, 0
      %v393 = vsel %vm388, %v360, 0
      %v396 = vsel %vm388, %v361, 0
      %v399 = vsel %vm388, %v362, 0
      %v402 = vsel %vm388, %v363, 0
      %v405 = vsel %vm388, %v364, 0
      %v408 = vsel %vm388, %v365, 0
      %v411 = vsel %vm388, %v366, 0
      %v414 = vsel %vm388, %v367, 0
      %v417 = vsel %vm388, %v368, 0
      %v420 = vsel %vm388, %v369, 0
      %v423 = vsel %vm388, %v370, 0
      %v426 = vsel %vm388, %v371, 0
      %v429 = vsel %vm388, %v372, 0
      %v432 = vsel %vm388, %v373, 0
      %v435 = vsel %vm388, %v374, 0
      %vm437 = vcmask 1043456
      %v439 = vsel %vm437, %v376, 0
      %441 = vmatprep.subr.mxu0 0.0
      %442 = vmatpush1.msra.mxu0 %v439
      %443 = vmatprep.subr.mxu0 0.0
      %444 = vmatpush1.msra.mxu0 0.0
      %445 = vmatprep.subr.mxu0 0.0
      %446 = vmatpush1.msra.mxu0 0.0
      %447 = vmatprep.subr.mxu0 0.0
      %448 = vmatpush1.msra.mxu0 0.0
      %449 = vmatprep.subr.mxu0 0.0
      %450 = vmatpush1.msra.mxu0 0.0
      %451 = vmatprep.subr.mxu0 0.0
      %452 = vmatpush1.msra.mxu0 0.0
      %453 = vmatprep.subr.mxu0 0.0
      %454 = vmatpush1.msra.mxu0 0.0
      %455 = vmatprep.subr.mxu0 0.0
      %456 = vmatpush1.msra.mxu0 0.0
      %457 = vmatprep.subr.mxu0 0.0
      %458 = vmatpush1.msra.mxu0 0.0
      %459 = vmatprep.subr.mxu0 0.0
      %460 = vmatpush1.msra.mxu0 0.0
      %461 = vmatprep.subr.mxu0 0.0
      %462 = vmatpush1.msra.mxu0 0.0
      %463 = vmatprep.subr.mxu0 0.0
      %464 = vmatpush1.msra.mxu0 0.0
      %465 = vmatprep.subr.mxu0 0.0
      %466 = vmatpush1.msra.mxu0 0.0
      %467 = vmatprep.subr.mxu0 0.0
      %468 = vmatpush1.msra.mxu0 0.0
      %469 = vmatprep.subr.mxu0 0.0
      %470 = vmatpush1.msra.mxu0 0.0
      %471 = vmatprep.subr.mxu0 0.0
      %472 = vmatpush1.msra.mxu0 0.0
      %473 = vmatprep.subr.mxu0 0.0
      %474 = vmatpush1.msra.mxu0 0.0
      %475 = vmatprep.subr.mxu0 0.0
      %476 = vmatpush1.msra.mxu0 0.0
      %477 = vmatprep.subr.mxu0 0.0
      %478 = vmatpush1.msra.mxu0 0.0
      %479 = vmatprep.subr.mxu0 0.0
      %480 = vmatpush1.msra.mxu0 0.0
      %481 = vmatprep.subr.mxu0 0.0
      %482 = vmatpush1.msra.mxu0 0.0
      %483 = vmatprep.subr.mxu0 0.0
      %484 = vmatpush1.msra.mxu0 0.0
      %485 = vmatprep.subr.mxu0 0.0
      %486 = vmatpush1.msra.mxu0 0.0
      %487 = vmatprep.subr.mxu0 0.0
      %488 = vmatpush1.msra.mxu0 0.0
      %489 = vmatprep.subr.mxu0 0.0
      %490 = vmatpush1.msra.mxu0 0.0
      %491 = vmatprep.subr.mxu0 0.0
      %492 = vmatpush1.msra.mxu0 0.0
      %493 = vmatprep.subr.mxu0 0.0
      %494 = vmatpush1.msra.mxu0 0.0
      %495 = vmatprep.subr.mxu0 0.0
      %496 = vmatpush1.msra.mxu0 0.0
      %497 = vmatprep.subr.mxu0 0.0
      %498 = vmatpush1.msra.mxu0 0.0
      %499 = vmatprep.subr.mxu0 0.0
      %500 = vmatpush1.msra.mxu0 0.0
      %501 = vmatprep.subr.mxu0 0.0
      %502 = vmatpush1.msra.mxu0 0.0
      %503 = vmatprep.subr.mxu0 0.0
      %504 = vmatpush1.msra.mxu0 0.0
      %505 = vmatprep.mubr.f32.mxu0 0.0
      %506 = vmatmul.mubr.f32.gmra.mrb[0].mxu0 %v390
      %v507 = vpop.f32.mrb[0].mxu0
      %v508 = vadd.f32 0.0, %v507
      %v509 = vpop.f32.mrb[0].mxu0
      %510 = vmatprep.mubr.f32.mxu0 0.0
      %511 = vmatmul.mubr.f32.gmra.mrb[0].mxu0 %v393
      %v512 = vpop.f32.mrb[0].mxu0
      %v513 = vadd.f32 0.0, %v512
      %v514 = vpop.f32.mrb[0].mxu0
      %515 = vmatprep.mubr.f32.mxu0 0.0
      %516 = vmatmul.mubr.f32.gmra.mrb[0].mxu0 %v396
      %v517 = vpop.f32.mrb[0].mxu0
      %v518 = vadd.f32 0.0, %v517
      %v519 = vpop.f32.mrb[0].mxu0
      %520 = vmatprep.mubr.f32.mxu0 0.0
      %521 = vmatmul.mubr.f32.gmra.mrb[0].mxu0 %v399
      %v522 = vpop.f32.mrb[0].mxu0
      %v523 = vadd.f32 0.0, %v522
      %v524 = vpop.f32.mrb[0].mxu0
      %525 = vmatprep.mubr.f32.mxu0 0.0
      %526 = vmatmul.mubr.f32.gmra.mrb[0].mxu0 %v402
      %v527 = vpop.f32.mrb[0].mxu0
      %v528 = vadd.f32 0.0, %v527
      %v529 = vpop.f32.mrb[0].mxu0
      %530 = vmatprep.mubr.f32.mxu0 0.0
      %531 = vmatmul.mubr.f32.gmra.mrb[0].mxu0 %v405
      %v532 = vpop.f32.mrb[0].mxu0
      %v533 = vadd.f32 0.0, %v532
      %v534 = vpop.f32.mrb[0].mxu0
      %535 = vmatprep.mubr.f32.mxu0 0.0
      %536 = vmatmul.mubr.f32.gmra.mrb[0].mxu0 %v408
      %v537 = vpop.f32.mrb[0].mxu0
      %v538 = vadd.f32 0.0, %v537
      %v539 = vpop.f32.mrb[0].mxu0
      %540 = vmatprep.mubr.f32.mxu0 0.0
      %541 = vmatmul.mubr.f32.gmra.mrb[0].mxu0 %v411
      %v542 = vpop.f32.mrb[0].mxu0
      %v543 = vadd.f32 0.0, %v542
      %v544 = vpop.f32.mrb[0].mxu0
      %545 = vmatprep.mubr.f32.mxu0 0.0
      %546 = vmatmul.mubr.f32.gmra.mrb[0].mxu0 %v414
      %v547 = vpop.f32.mrb[0].mxu0
      %v548 = vadd.f32 0.0, %v547
      %v549 = vpop.f32.mrb[0].mxu0
      %550 = vmatprep.mubr.f32.mxu0 0.0
      %551 = vmatmul.mubr.f32.gmra.mrb[0].mxu0 %v417
      %v552 = vpop.f32.mrb[0].mxu0
      %v553 = vadd.f32 0.0, %v552
      %v554 = vpop.f32.mrb[0].mxu0
      %555 = vmatprep.mubr.f32.mxu0 0.0
      %556 = vmatmul.mubr.f32.gmra.mrb[0].mxu0 %v420
      %v557 = vpop.f32.mrb[0].mxu0
      %v558 = vadd.f32 0.0, %v557
      %v559 = vpop.f32.mrb[0].mxu0
      %560 = vmatprep.mubr.f32.mxu0 0.0
      %561 = vmatmul.mubr.f32.gmra.mrb[0].mxu0 %v423
      %v562 = vpop.f32.mrb[0].mxu0
      %v563 = vadd.f32 0.0, %v562
      %v564 = vpop.f32.mrb[0].mxu0
      %565 = vmatprep.mubr.f32.mxu0 0.0
      %566 = vmatmul.mubr.f32.gmra.mrb[0].mxu0 %v426
      %v567 = vpop.f32.mrb[0].mxu0
      %v568 = vadd.f32 0.0, %v567
      %v569 = vpop.f32.mrb[0].mxu0
      %570 = vmatprep.mubr.f32.mxu0 0.0
      %571 = vmatmul.mubr.f32.gmra.mrb[0].mxu0 %v429
      %v572 = vpop.f32.mrb[0].mxu0
      %v573 = vadd.f32 0.0, %v572
      %v574 = vpop.f32.mrb[0].mxu0
      %575 = vmatprep.mubr.f32.mxu0 0.0
      %576 = vmatmul.mubr.f32.gmra.mrb[0].mxu0 %v432
      %v577 = vpop.f32.mrb[0].mxu0
      %v578 = vadd.f32 0.0, %v577
      %v579 = vpop.f32.mrb[0].mxu0
      %580 = vmatprep.mubr.f32.mxu0 0.0
      %581 = vmatmul.mubr.f32.gmra.mrb[0].mxu0 %v435
      %v582 = vpop.f32.mrb[0].mxu0
      %v583 = vadd.f32 0.0, %v582
      %v584 = vpop.f32.mrb[0].mxu0
      %585 = vdwg.mxu0
      %vm586 = vcmask 64512
      %v588 = vsel %vm586, %v245, 0
      %v591 = vsel %vm586, %v246, 0
      %v594 = vsel %vm586, %v247, 0
      %v597 = vsel %vm586, %v248, 0
      %v600 = vsel %vm586, %v249, 0
      %v603 = vsel %vm586, %v250, 0
      %v606 = vsel %vm586, %v251, 0
      %v609 = vsel %vm586, %v252, 0
      %v612 = vsel %vm586, %v253, 0
      %v615 = vsel %vm586, %v254, 0
      %v618 = vsel %vm586, %v255, 0
      %v621 = vsel %vm586, %v256, 0
      %v624 = vsel %vm586, %v257, 0
      %v627 = vsel %vm586, %v258, 0
      %v630 = vsel %vm586, %v259, 0
      %v633 = vsel %vm586, %v260, 0
      %635 = vmatprep.subr.mxu0 0.0
      %636 = vmatpush1.msra.mxu0 %v375
      %637 = vmatprep.subr.mxu0 0.0
      %638 = vmatpush1.msra.mxu0 0.0
      %639 = vmatprep.subr.mxu0 0.0
      %640 = vmatpush1.msra.mxu0 0.0
      %641 = vmatprep.subr.mxu0 0.0
      %642 = vmatpush1.msra.mxu0 0.0
      %643 = vmatprep.subr.mxu0 0.0
      %644 = vmatpush1.msra.mxu0 0.0
      %645 = vmatprep.subr.mxu0 0.0
      %646 = vmatpush1.msra.mxu0 0.0
      %647 = vmatprep.subr.mxu0 0.0
      %648 = vmatpush1.msra.mxu0 0.0
      %649 = vmatprep.subr.mxu0 0.0
      %650 = vmatpush1.msra.mxu0 0.0
      %651 = vmatprep.subr.mxu0 0.0
      %652 = vmatpush1.msra.mxu0 0.0
      %653 = vmatprep.subr.mxu0 0.0
      %654 = vmatpush1.msra.mxu0 0.0
      %655 = vmatprep.subr.mxu0 0.0
      %656 = vmatpush1.msra.mxu0 0.0
      %657 = vmatprep.subr.mxu0 0.0
      %658 = vmatpush1.msra.mxu0 0.0
      %659 = vmatprep.subr.mxu0 0.0
      %660 = vmatpush1.msra.mxu0 0.0
      %661 = vmatprep.subr.mxu0 0.0
      %662 = vmatpush1.msra.mxu0 0.0
      %663 = vmatprep.subr.mxu0 0.0
      %664 = vmatpush1.msra.mxu0 0.0
      %665 = vmatprep.subr.mxu0 0.0
      %666 = vmatpush1.msra.mxu0 0.0
      %667 = vmatprep.subr.mxu0 0.0
      %668 = vmatpush1.msra.mxu0 0.0
      %669 = vmatprep.subr.mxu0 0.0
      %670 = vmatpush1.msra.mxu0 0.0
      %671 = vmatprep.subr.mxu0 0.0
      %672 = vmatpush1.msra.mxu0 0.0
      %673 = vmatprep.subr.mxu0 0.0
      %674 = vmatpush1.msra.mxu0 0.0
      %675 = vmatprep.subr.mxu0 0.0
      %676 = vmatpush1.msra.mxu0 0.0
      %677 = vmatprep.subr.mxu0 0.0
      %678 = vmatpush1.msra.mxu0 0.0
      %679 = vmatprep.subr.mxu0 0.0
      %680 = vmatpush1.msra.mxu0 0.0
      %681 = vmatprep.subr.mxu0 0.0
      %682 = vmatpush1.msra.mxu0 0.0
      %683 = vmatprep.subr.mxu0 0.0
      %684 = vmatpush1.msra.mxu0 0.0
      %685 = vmatprep.subr.mxu0 0.0
      %686 = vmatpush1.msra.mxu0 0.0
      %687 = vmatprep.subr.mxu0 0.0
      %688 = vmatpush1.msra.mxu0 0.0
      %689 = vmatprep.subr.mxu0 0.0
      %690 = vmatpush1.msra.mxu0 0.0
      %691 = vmatprep.subr.mxu0 0.0
      %692 = vmatpush1.msra.mxu0 0.0
      %693 = vmatprep.subr.mxu0 0.0
      %694 = vmatpush1.msra.mxu0 0.0
      %695 = vmatprep.subr.mxu0 0.0
      %696 = vmatpush1.msra.mxu0 0.0
      %697 = vmatprep.subr.mxu0 0.0
      %698 = vmatpush1.msra.mxu0 0.0
      %699 = vmatprep.mubr.f32.mxu0 0.0
      %700 = vmatmul.mubr.f32.gmra.mrb[0].mxu0 %v588
      %v701 = vpop.f32.mrb[0].mxu0
      %v702 = vadd.f32 %v508, %v701
      %v703 = vpop.f32.mrb[0].mxu0
      %704 = vmatprep.mubr.f32.mxu0 0.0
      %705 = vmatmul.mubr.f32.gmra.mrb[0].mxu0 %v591
      %v706 = vpop.f32.mrb[0].mxu0
      %v707 = vadd.f32 %v513, %v706
      %v708 = vpop.f32.mrb[0].mxu0
      %709 = vmatprep.mubr.f32.mxu0 0.0
      %710 = vmatmul.mubr.f32.gmra.mrb[0].mxu0 %v594
      %v711 = vpop.f32.mrb[0].mxu0
      %v712 = vadd.f32 %v518, %v711
      %v713 = vpop.f32.mrb[0].mxu0
      %714 = vmatprep.mubr.f32.mxu0 0.0
      %715 = vmatmul.mubr.f32.gmra.mrb[0].mxu0 %v597
      %v716 = vpop.f32.mrb[0].mxu0
      %v717 = vadd.f32 %v523, %v716
      %v718 = vpop.f32.mrb[0].mxu0
      %719 = vmatprep.mubr.f32.mxu0 0.0
      %720 = vmatmul.mubr.f32.gmra.mrb[0].mxu0 %v600
      %v721 = vpop.f32.mrb[0].mxu0
      %v722 = vadd.f32 %v528, %v721
      %v723 = vpop.f32.mrb[0].mxu0
      %724 = vmatprep.mubr.f32.mxu0 0.0
      %725 = vmatmul.mubr.f32.gmra.mrb[0].mxu0 %v603
      %v726 = vpop.f32.mrb[0].mxu0
      %v727 = vadd.f32 %v533, %v726
      %v728 = vpop.f32.mrb[0].mxu0
      %729 = vmatprep.mubr.f32.mxu0 0.0
      %730 = vmatmul.mubr.f32.gmra.mrb[0].mxu0 %v606
      %v731 = vpop.f32.mrb[0].mxu0
      %v732 = vadd.f32 %v538, %v731
      %v733 = vpop.f32.mrb[0].mxu0
      %734 = vmatprep.mubr.f32.mxu0 0.0
      %735 = vmatmul.mubr.f32.gmra.mrb[0].mxu0 %v609
      %v736 = vpop.f32.mrb[0].mxu0
      %v737 = vadd.f32 %v543, %v736
      %v738 = vpop.f32.mrb[0].mxu0
      %739 = vmatprep.mubr.f32.mxu0 0.0
      %740 = vmatmul.mubr.f32.gmra.mrb[0].mxu0 %v612
      %v741 = vpop.f32.mrb[0].mxu0
      %v742 = vadd.f32 %v548, %v741
      %v743 = vpop.f32.mrb[0].mxu0
      %744 = vmatprep.mubr.f32.mxu0 0.0
      %745 = vmatmul.mubr.f32.gmra.mrb[0].mxu0 %v615
      %v746 = vpop.f32.mrb[0].mxu0
      %v747 = vadd.f32 %v553, %v746
      %v748 = vpop.f32.mrb[0].mxu0
      %749 = vmatprep.mubr.f32.mxu0 0.0
      %750 = vmatmul.mubr.f32.gmra.mrb[0].mxu0 %v618
      %v751 = vpop.f32.mrb[0].mxu0
      %v752 = vadd.f32 %v558, %v751
      %v753 = vpop.f32.mrb[0].mxu0
      %754 = vmatprep.mubr.f32.mxu0 0.0
      %755 = vmatmul.mubr.f32.gmra.mrb[0].mxu0 %v621
      %v756 = vpop.f32.mrb[0].mxu0
      %v757 = vadd.f32 %v563, %v756
      %v758 = vpop.f32.mrb[0].mxu0
      %759 = vmatprep.mubr.f32.mxu0 0.0
      %760 = vmatmul.mubr.f32.gmra.mrb[0].mxu0 %v624
      %v761 = vpop.f32.mrb[0].mxu0
      %v762 = vadd.f32 %v568, %v761
      %v763 = vpop.f32.mrb[0].mxu0
      %764 = vmatprep.mubr.f32.mxu0 0.0
      %765 = vmatmul.mubr.f32.gmra.mrb[0].mxu0 %v627
      %v766 = vpop.f32.mrb[0].mxu0
      %v767 = vadd.f32 %v573, %v766
      %v768 = vpop.f32.mrb[0].mxu0
      %769 = vmatprep.mubr.f32.mxu0 0.0
      %770 = vmatmul.mubr.f32.gmra.mrb[0].mxu0 %v630
      %v771 = vpop.f32.mrb[0].mxu0
      %v772 = vadd.f32 %v578, %v771
      %v773 = vpop.f32.mrb[0].mxu0
      %774 = vmatprep.mubr.f32.mxu0 0.0
      %775 = vmatmul.mubr.f32.gmra.mrb[0].mxu0 %v633
      %v776 = vpop.f32.mrb[0].mxu0
      %v777 = vadd.f32 %v583, %v776
      %v778 = vpop.f32.mrb[0].mxu0
      %779 = vdwg.mxu0
      %v780 = vlaneseq
      %v781 = vshrl.u32 %v780, 7
      %v782 = vsub.s32 0, %v781
      %v783 = vrot.slane %v385, %v782
      %v784 = vadd.f32 %v702, %v783
      %v785 = vadd.f32 %v707, %v783
      %v786 = vadd.f32 %v712, %v783
      %v787 = vadd.f32 %v717, %v783
      %v788 = vadd.f32 %v722, %v783
      %v789 = vadd.f32 %v727, %v783
      %v790 = vadd.f32 %v732, %v783
      %v791 = vadd.f32 %v737, %v783
      %v792 = vadd.f32 %v742, %v783
      %v793 = vadd.f32 %v747, %v783
      %v794 = vadd.f32 %v752, %v783
      %v795 = vadd.f32 %v757, %v783
      %v796 = vadd.f32 %v762, %v783
      %v797 = vadd.f32 %v767, %v783
      %v798 = vadd.f32 %v772, %v783
      %v799 = vadd.f32 %v777, %v783
      %v800 = vtanh.pop %v784
      %v801 = vtanh.pop %v785
      %v802 = vtanh.pop %v786
      %v803 = vtanh.pop %v787
      %v804 = vtanh.pop %v788
      %v805 = vtanh.pop %v789
      %v806 = vtanh.pop %v790
      %v807 = vtanh.pop %v791
      %v808 = vtanh.pop %v792
      %v809 = vtanh.pop %v793
      %v810 = vtanh.pop %v794
      %v811 = vtanh.pop %v795
      %v812 = vtanh.pop %v796
      %v813 = vtanh.pop %v797
      %v814 = vtanh.pop %v798
      %v815 = vtanh.pop %v799
      %v816 = vlaneseq
      %v817 = vshrl.u32 %v816, 7
      %v818 = vsub.s32 0, %v817
      %v819 = vrot.slane %v386, %v818
      %vm820 = vcmask 261120
      %v822 = vsel %vm820, %v800, 0
      %v825 = vsel %vm820, %v801, 0
      %v828 = vsel %vm820, %v802, 0
      %v831 = vsel %vm820, %v803, 0
      %v834 = vsel %vm820, %v804, 0
      %v837 = vsel %vm820, %v805, 0
      %v840 = vsel %vm820, %v806, 0
      %v843 = vsel %vm820, %v807, 0
      %v846 = vsel %vm820, %v808, 0
      %v849 = vsel %vm820, %v809, 0
      %v852 = vsel %vm820, %v810, 0
      %v855 = vsel %vm820, %v811, 0
      %v858 = vsel %vm820, %v812, 0
      %v861 = vsel %vm820, %v813, 0
      %v864 = vsel %vm820, %v814, 0
      %v867 = vsel %vm820, %v815, 0
      %869 = vmatprep.subr.mxu0 0.0
      %870 = vmatpush1.msra.mxu0 %v377
      %871 = vmatprep.subr.mxu0 0.0
      %872 = vmatpush1.msra.mxu0 %v378
      %873 = vmatprep.subr.mxu0 0.0
      %874 = vmatpush1.msra.mxu0 %v379
      %875 = vmatprep.subr.mxu0 0.0
      %876 = vmatpush1.msra.mxu0 %v380
      %877 = vmatprep.subr.mxu0 0.0
      %878 = vmatpush1.msra.mxu0 0.0
      %879 = vmatprep.subr.mxu0 0.0
      %880 = vmatpush1.msra.mxu0 0.0
      %881 = vmatprep.subr.mxu0 0.0
      %882 = vmatpush1.msra.mxu0 0.0
      %883 = vmatprep.subr.mxu0 0.0
      %884 = vmatpush1.msra.mxu0 0.0
      %885 = vmatprep.subr.mxu0 0.0
      %886 = vmatpush1.msra.mxu0 0.0
      %887 = vmatprep.subr.mxu0 0.0
      %888 = vmatpush1.msra.mxu0 0.0
      %889 = vmatprep.subr.mxu0 0.0
      %890 = vmatpush1.msra.mxu0 0.0
      %891 = vmatprep.subr.mxu0 0.0
      %892 = vmatpush1.msra.mxu0 0.0
      %893 = vmatprep.subr.mxu0 0.0
      %894 = vmatpush1.msra.mxu0 0.0
      %895 = vmatprep.subr.mxu0 0.0
      %896 = vmatpush1.msra.mxu0 0.0
      %897 = vmatprep.subr.mxu0 0.0
      %898 = vmatpush1.msra.mxu0 0.0
      %899 = vmatprep.subr.mxu0 0.0
      %900 = vmatpush1.msra.mxu0 0.0
      %901 = vmatprep.subr.mxu0 0.0
      %902 = vmatpush1.msra.mxu0 0.0
      %903 = vmatprep.subr.mxu0 0.0
      %904 = vmatpush1.msra.mxu0 0.0
      %905 = vmatprep.subr.mxu0 0.0
      %906 = vmatpush1.msra.mxu0 0.0
      %907 = vmatprep.subr.mxu0 0.0
      %908 = vmatpush1.msra.mxu0 0.0
      %909 = vmatprep.subr.mxu0 0.0
      %910 = vmatpush1.msra.mxu0 0.0
      %911 = vmatprep.subr.mxu0 0.0
      %912 = vmatpush1.msra.mxu0 0.0
      %913 = vmatprep.subr.mxu0 0.0
      %914 = vmatpush1.msra.mxu0 0.0
      %915 = vmatprep.subr.mxu0 0.0
      %916 = vmatpush1.msra.mxu0 0.0
      %917 = vmatprep.subr.mxu0 0.0
      %918 = vmatpush1.msra.mxu0 0.0
      %919 = vmatprep.subr.mxu0 0.0
      %920 = vmatpush1.msra.mxu0 0.0
      %921 = vmatprep.subr.mxu0 0.0
      %922 = vmatpush1.msra.mxu0 0.0
      %923 = vmatprep.subr.mxu0 0.0
      %924 = vmatpush1.msra.mxu0 0.0
      %925 = vmatprep.subr.mxu0 0.0
      %926 = vmatpush1.msra.mxu0 0.0
      %927 = vmatprep.subr.mxu0 0.0
      %928 = vmatpush1.msra.mxu0 0.0
      %929 = vmatprep.subr.mxu0 0.0
      %930 = vmatpush1.msra.mxu0 0.0
      %931 = vmatprep.subr.mxu0 0.0
      %932 = vmatpush1.msra.mxu0 0.0
      %933 = vmatprep.mubr.f32.mxu0 0.0
      %934 = vmatmul.mubr.f32.gmra.mrb[0].mxu0 %v822
      %v935 = vpop.f32.mrb[0].mxu0
      %v936 = vadd.f32 %v819, %v935
      %v937 = vpop.f32.mrb[0].mxu0
      %938 = vmatprep.mubr.f32.mxu0 0.0
      %939 = vmatmul.mubr.f32.gmra.mrb[0].mxu0 %v825
      %v940 = vpop.f32.mrb[0].mxu0
      %v941 = vadd.f32 %v819, %v940
      %v942 = vpop.f32.mrb[0].mxu0
      %943 = vmatprep.mubr.f32.mxu0 0.0
      %944 = vmatmul.mubr.f32.gmra.mrb[0].mxu0 %v828
      %v945 = vpop.f32.mrb[0].mxu0
      %v946 = vadd.f32 %v819, %v945
      %v947 = vpop.f32.mrb[0].mxu0
      %948 = vmatprep.mubr.f32.mxu0 0.0
      %949 = vmatmul.mubr.f32.gmra.mrb[0].mxu0 %v831
      %v950 = vpop.f32.mrb[0].mxu0
      %v951 = vadd.f32 %v819, %v950
      %v952 = vpop.f32.mrb[0].mxu0
      %953 = vmatprep.mubr.f32.mxu0 0.0
      %954 = vmatmul.mubr.f32.gmra.mrb[0].mxu0 %v834
      %v955 = vpop.f32.mrb[0].mxu0
      %v956 = vadd.f32 %v819, %v955
      %v957 = vpop.f32.mrb[0].mxu0
      %958 = vmatprep.mubr.f32.mxu0 0.0
      %959 = vmatmul.mubr.f32.gmra.mrb[0].mxu0 %v837
      %v960 = vpop.f32.mrb[0].mxu0
      %v961 = vadd.f32 %v819, %v960
      %v962 = vpop.f32.mrb[0].mxu0
      %963 = vmatprep.mubr.f32.mxu0 0.0
      %964 = vmatmul.mubr.f32.gmra.mrb[0].mxu0 %v840
      %v965 = vpop.f32.mrb[0].mxu0
      %v966 = vadd.f32 %v819, %v965
      %v967 = vpop.f32.mrb[0].mxu0
      %968 = vmatprep.mubr.f32.mxu0 0.0
      %969 = vmatmul.mubr.f32.gmra.mrb[0].mxu0 %v843
      %v970 = vpop.f32.mrb[0].mxu0
      %v971 = vadd.f32 %v819, %v970
      %v972 = vpop.f32.mrb[0].mxu0
      %973 = vmatprep.mubr.f32.mxu0 0.0
      %974 = vmatmul.mubr.f32.gmra.mrb[0].mxu0 %v846
      %v975 = vpop.f32.mrb[0].mxu0
      %v976 = vadd.f32 %v819, %v975
      %v977 = vpop.f32.mrb[0].mxu0
      %978 = vmatprep.mubr.f32.mxu0 0.0
      %979 = vmatmul.mubr.f32.gmra.mrb[0].mxu0 %v849
      %v980 = vpop.f32.mrb[0].mxu0
      %v981 = vadd.f32 %v819, %v980
      %v982 = vpop.f32.mrb[0].mxu0
      %983 = vmatprep.mubr.f32.mxu0 0.0
      %984 = vmatmul.mubr.f32.gmra.mrb[0].mxu0 %v852
      %v985 = vpop.f32.mrb[0].mxu0
      %v986 = vadd.f32 %v819, %v985
      %v987 = vpop.f32.mrb[0].mxu0
      %988 = vmatprep.mubr.f32.mxu0 0.0
      %989 = vmatmul.mubr.f32.gmra.mrb[0].mxu0 %v855
      %v990 = vpop.f32.mrb[0].mxu0
      %v991 = vadd.f32 %v819, %v990
      %v992 = vpop.f32.mrb[0].mxu0
      %993 = vmatprep.mubr.f32.mxu0 0.0
      %994 = vmatmul.mubr.f32.gmra.mrb[0].mxu0 %v858
      %v995 = vpop.f32.mrb[0].mxu0
      %v996 = vadd.f32 %v819, %v995
      %v997 = vpop.f32.mrb[0].mxu0
      %998 = vmatprep.mubr.f32.mxu0 0.0
      %999 = vmatmul.mubr.f32.gmra.mrb[0].mxu0 %v861
      %v1000 = vpop.f32.mrb[0].mxu0
      %v1001 = vadd.f32 %v819, %v1000
      %v1002 = vpop.f32.mrb[0].mxu0
      %1003 = vmatprep.mubr.f32.mxu0 0.0
      %1004 = vmatmul.mubr.f32.gmra.mrb[0].mxu0 %v864
      %v1005 = vpop.f32.mrb[0].mxu0
      %v1006 = vadd.f32 %v819, %v1005
      %v1007 = vpop.f32.mrb[0].mxu0
      %1008 = vmatprep.mubr.f32.mxu0 0.0
      %1009 = vmatmul.mubr.f32.gmra.mrb[0].mxu0 %v867
      %v1010 = vpop.f32.mrb[0].mxu0
      %v1011 = vadd.f32 %v819, %v1010
      %v1012 = vpop.f32.mrb[0].mxu0
      %1013 = vdwg.mxu0
      %v1014 = vtanh.pop %v936
      %v1015 = vtanh.pop %v941
      %v1016 = vtanh.pop %v946
      %v1017 = vtanh.pop %v951
      %v1018 = vtanh.pop %v956
      %v1019 = vtanh.pop %v961
      %v1020 = vtanh.pop %v966
      %v1021 = vtanh.pop %v971
      %v1022 = vtanh.pop %v976
      %v1023 = vtanh.pop %v981
      %v1024 = vtanh.pop %v986
      %v1025 = vtanh.pop %v991
      %v1026 = vtanh.pop %v996
      %v1027 = vtanh.pop %v1001
      %v1028 = vtanh.pop %v1006
      %v1029 = vtanh.pop %v1011
      %v1030 = vlaneseq
      %v1031 = vshrl.u32 %v1030, 7
      %v1032 = vsub.s32 0, %v1031
      %v1033 = vrot.slane %v387, %v1032
      %v1035 = vsel %vm820, %v1014, 0
      %v1038 = vsel %vm820, %v1015, 0
      %v1041 = vsel %vm820, %v1016, 0
      %v1044 = vsel %vm820, %v1017, 0
      %v1047 = vsel %vm820, %v1018, 0
      %v1050 = vsel %vm820, %v1019, 0
      %v1053 = vsel %vm820, %v1020, 0
      %v1056 = vsel %vm820, %v1021, 0
      %v1059 = vsel %vm820, %v1022, 0
      %v1062 = vsel %vm820, %v1023, 0
      %v1065 = vsel %vm820, %v1024, 0
      %v1068 = vsel %vm820, %v1025, 0
      %v1071 = vsel %vm820, %v1026, 0
      %v1074 = vsel %vm820, %v1027, 0
      %v1077 = vsel %vm820, %v1028, 0
      %v1080 = vsel %vm820, %v1029, 0
      %1082 = vmatprep.subr.mxu0 0.0
      %1083 = vmatpush1.msra.mxu0 %v381
      %1084 = vmatprep.subr.mxu0 0.0
      %1085 = vmatpush1.msra.mxu0 %v382
      %1086 = vmatprep.subr.mxu0 0.0
      %1087 = vmatpush1.msra.mxu0 %v383
      %1088 = vmatprep.subr.mxu0 0.0
      %1089 = vmatpush1.msra.mxu0 %v384
      %1090 = vmatprep.subr.mxu0 0.0
      %1091 = vmatpush1.msra.mxu0 0.0
      %1092 = vmatprep.subr.mxu0 0.0
      %1093 = vmatpush1.msra.mxu0 0.0
      %1094 = vmatprep.subr.mxu0 0.0
      %1095 = vmatpush1.msra.mxu0 0.0
      %1096 = vmatprep.subr.mxu0 0.0
      %1097 = vmatpush1.msra.mxu0 0.0
      %1098 = vmatprep.subr.mxu0 0.0
      %1099 = vmatpush1.msra.mxu0 0.0
      %1100 = vmatprep.subr.mxu0 0.0
      %1101 = vmatpush1.msra.mxu0 0.0
      %1102 = vmatprep.subr.mxu0 0.0
      %1103 = vmatpush1.msra.mxu0 0.0
      %1104 = vmatprep.subr.mxu0 0.0
      %1105 = vmatpush1.msra.mxu0 0.0
      %1106 = vmatprep.subr.mxu0 0.0
      %1107 = vmatpush1.msra.mxu0 0.0
      %1108 = vmatprep.subr.mxu0 0.0
      %1109 = vmatpush1.msra.mxu0 0.0
      %1110 = vmatprep.subr.mxu0 0.0
      %1111 = vmatpush1.msra.mxu0 0.0
      %1112 = vmatprep.subr.mxu0 0.0
      %1113 = vmatpush1.msra.mxu0 0.0
      %1114 = vmatprep.subr.mxu0 0.0
      %1115 = vmatpush1.msra.mxu0 0.0
      %1116 = vmatprep.subr.mxu0 0.0
      %1117 = vmatpush1.msra.mxu0 0.0
      %1118 = vmatprep.subr.mxu0 0.0
      %1119 = vmatpush1.msra.mxu0 0.0
      %1120 = vmatprep.subr.mxu0 0.0
      %1121 = vmatpush1.msra.mxu0 0.0
      %1122 = vmatprep.subr.mxu0 0.0
      %1123 = vmatpush1.msra.mxu0 0.0
      %1124 = vmatprep.subr.mxu0 0.0
      %1125 = vmatpush1.msra.mxu0 0.0
      %1126 = vmatprep.subr.mxu0 0.0
      %1127 = vmatpush1.msra.mxu0 0.0
      %1128 = vmatprep.subr.mxu0 0.0
      %1129 = vmatpush1.msra.mxu0 0.0
      %1130 = vmatprep.subr.mxu0 0.0
      %1131 = vmatpush1.msra.mxu0 0.0
      %1132 = vmatprep.subr.mxu0 0.0
      %1133 = vmatpush1.msra.mxu0 0.0
      %1134 = vmatprep.subr.mxu0 0.0
      %1135 = vmatpush1.msra.mxu0 0.0
      %1136 = vmatprep.subr.mxu0 0.0
      %1137 = vmatpush1.msra.mxu0 0.0
      %1138 = vmatprep.subr.mxu0 0.0
      %1139 = vmatpush1.msra.mxu0 0.0
      %1140 = vmatprep.subr.mxu0 0.0
      %1141 = vmatpush1.msra.mxu0 0.0
      %1142 = vmatprep.subr.mxu0 0.0
      %1143 = vmatpush1.msra.mxu0 0.0
      %1144 = vmatprep.subr.mxu0 0.0
      %1145 = vmatpush1.msra.mxu0 0.0
      %1146 = vmatprep.mubr.f32.mxu0 0.0
      %1147 = vmatmul.mubr.f32.gmra.mrb[0].mxu0 %v1035
      %v1148 = vpop.f32.mrb[0].mxu0
      %v1149 = vadd.f32 %v1033, %v1148
      %v1150 = vpop.f32.mrb[0].mxu0
      %1151 = vmatprep.mubr.f32.mxu0 0.0
      %1152 = vmatmul.mubr.f32.gmra.mrb[0].mxu0 %v1038
      %v1153 = vpop.f32.mrb[0].mxu0
      %v1154 = vadd.f32 %v1033, %v1153
      %v1155 = vpop.f32.mrb[0].mxu0
      %1156 = vmatprep.mubr.f32.mxu0 0.0
      %1157 = vmatmul.mubr.f32.gmra.mrb[0].mxu0 %v1041
      %v1158 = vpop.f32.mrb[0].mxu0
      %v1159 = vadd.f32 %v1033, %v1158
      %v1160 = vpop.f32.mrb[0].mxu0
      %1161 = vmatprep.mubr.f32.mxu0 0.0
      %1162 = vmatmul.mubr.f32.gmra.mrb[0].mxu0 %v1044
      %v1163 = vpop.f32.mrb[0].mxu0
      %v1164 = vadd.f32 %v1033, %v1163
      %v1165 = vpop.f32.mrb[0].mxu0
      %1166 = vmatprep.mubr.f32.mxu0 0.0
      %1167 = vmatmul.mubr.f32.gmra.mrb[0].mxu0 %v1047
      %v1168 = vpop.f32.mrb[0].mxu0
      %v1169 = vadd.f32 %v1033, %v1168
      %v1170 = vpop.f32.mrb[0].mxu0
      %1171 = vmatprep.mubr.f32.mxu0 0.0
      %1172 = vmatmul.mubr.f32.gmra.mrb[0].mxu0 %v1050
      %v1173 = vpop.f32.mrb[0].mxu0
      %v1174 = vadd.f32 %v1033, %v1173
      %v1175 = vpop.f32.mrb[0].mxu0
      %1176 = vmatprep.mubr.f32.mxu0 0.0
      %1177 = vmatmul.mubr.f32.gmra.mrb[0].mxu0 %v1053
      %v1178 = vpop.f32.mrb[0].mxu0
      %v1179 = vadd.f32 %v1033, %v1178
      %v1180 = vpop.f32.mrb[0].mxu0
      %1181 = vmatprep.mubr.f32.mxu0 0.0
      %1182 = vmatmul.mubr.f32.gmra.mrb[0].mxu0 %v1056
      %v1183 = vpop.f32.mrb[0].mxu0
      %v1184 = vadd.f32 %v1033, %v1183
      %v1185 = vpop.f32.mrb[0].mxu0
      %1186 = vmatprep.mubr.f32.mxu0 0.0
      %1187 = vmatmul.mubr.f32.gmra.mrb[0].mxu0 %v1059
      %v1188 = vpop.f32.mrb[0].mxu0
      %v1189 = vadd.f32 %v1033, %v1188
      %v1190 = vpop.f32.mrb[0].mxu0
      %1191 = vmatprep.mubr.f32.mxu0 0.0
      %1192 = vmatmul.mubr.f32.gmra.mrb[0].mxu0 %v1062
      %v1193 = vpop.f32.mrb[0].mxu0
      %v1194 = vadd.f32 %v1033, %v1193
      %v1195 = vpop.f32.mrb[0].mxu0
      %1196 = vmatprep.mubr.f32.mxu0 0.0
      %1197 = vmatmul.mubr.f32.gmra.mrb[0].mxu0 %v1065
      %v1198 = vpop.f32.mrb[0].mxu0
      %v1199 = vadd.f32 %v1033, %v1198
      %v1200 = vpop.f32.mrb[0].mxu0
      %1201 = vmatprep.mubr.f32.mxu0 0.0
      %1202 = vmatmul.mubr.f32.gmra.mrb[0].mxu0 %v1068
      %v1203 = vpop.f32.mrb[0].mxu0
      %v1204 = vadd.f32 %v1033, %v1203
      %v1205 = vpop.f32.mrb[0].mxu0
      %1206 = vmatprep.mubr.f32.mxu0 0.0
      %1207 = vmatmul.mubr.f32.gmra.mrb[0].mxu0 %v1071
      %v1208 = vpop.f32.mrb[0].mxu0
      %v1209 = vadd.f32 %v1033, %v1208
      %v1210 = vpop.f32.mrb[0].mxu0
      %1211 = vmatprep.mubr.f32.mxu0 0.0
      %1212 = vmatmul.mubr.f32.gmra.mrb[0].mxu0 %v1074
      %v1213 = vpop.f32.mrb[0].mxu0
      %v1214 = vadd.f32 %v1033, %v1213
      %v1215 = vpop.f32.mrb[0].mxu0
      %1216 = vmatprep.mubr.f32.mxu0 0.0
      %1217 = vmatmul.mubr.f32.gmra.mrb[0].mxu0 %v1077
      %v1218 = vpop.f32.mrb[0].mxu0
      %v1219 = vadd.f32 %v1033, %v1218
      %v1220 = vpop.f32.mrb[0].mxu0
      %1221 = vmatprep.mubr.f32.mxu0 0.0
      %1222 = vmatmul.mubr.f32.gmra.mrb[0].mxu0 %v1080
      %v1223 = vpop.f32.mrb[0].mxu0
      %v1224 = vadd.f32 %v1033, %v1223
      %v1225 = vpop.f32.mrb[0].mxu0
      %1226 = vdwg.mxu0
      %v1227 = vmul.f32 %v1149, 0.5
      %v1228 = vmul.f32 %v1154, 0.5
      %v1229 = vmul.f32 %v1159, 0.5
      %v1230 = vmul.f32 %v1164, 0.5
      %v1231 = vmul.f32 %v1169, 0.5
      %v1232 = vmul.f32 %v1174, 0.5
      %v1233 = vmul.f32 %v1179, 0.5
      %v1234 = vmul.f32 %v1184, 0.5
      %v1235 = vmul.f32 %v1189, 0.5
      %v1236 = vmul.f32 %v1194, 0.5
      %v1237 = vmul.f32 %v1199, 0.5
      %v1238 = vmul.f32 %v1204, 0.5
      %v1239 = vmul.f32 %v1209, 0.5
      %v1240 = vmul.f32 %v1214, 0.5
      %v1241 = vmul.f32 %v1219, 0.5
      %v1242 = vmul.f32 %v1224, 0.5
      %v1243 = vtanh.pop %v1227
      %v1244 = vtanh.pop %v1228
      %v1245 = vtanh.pop %v1229
      %v1246 = vtanh.pop %v1230
      %v1247 = vtanh.pop %v1231
      %v1248 = vtanh.pop %v1232
      %v1249 = vtanh.pop %v1233
      %v1250 = vtanh.pop %v1234
      %v1251 = vtanh.pop %v1235
      %v1252 = vtanh.pop %v1236
      %v1253 = vtanh.pop %v1237
      %v1254 = vtanh.pop %v1238
      %v1255 = vtanh.pop %v1239
      %v1256 = vtanh.pop %v1240
      %v1257 = vtanh.pop %v1241
      %v1258 = vtanh.pop %v1242
      %v1259 = vadd.f32 %v1243, 1.0
      %v1260 = vadd.f32 %v1244, 1.0
      %v1261 = vadd.f32 %v1245, 1.0
      %v1262 = vadd.f32 %v1246, 1.0
      %v1263 = vadd.f32 %v1247, 1.0
      %v1264 = vadd.f32 %v1248, 1.0
      %v1265 = vadd.f32 %v1249, 1.0
      %v1266 = vadd.f32 %v1250, 1.0
      %v1267 = vadd.f32 %v1251, 1.0
      %v1268 = vadd.f32 %v1252, 1.0
      %v1269 = vadd.f32 %v1253, 1.0
      %v1270 = vadd.f32 %v1254, 1.0
      %v1271 = vadd.f32 %v1255, 1.0
      %v1272 = vadd.f32 %v1256, 1.0
      %v1273 = vadd.f32 %v1257, 1.0
      %v1274 = vadd.f32 %v1258, 1.0
      %v1275 = vmul.f32 %v1259, 0.5
      %v1276 = vmul.f32 %v1260, 0.5
      %v1277 = vmul.f32 %v1261, 0.5
      %v1278 = vmul.f32 %v1262, 0.5
      %v1279 = vmul.f32 %v1263, 0.5
      %v1280 = vmul.f32 %v1264, 0.5
      %v1281 = vmul.f32 %v1265, 0.5
      %v1282 = vmul.f32 %v1266, 0.5
      %v1283 = vmul.f32 %v1267, 0.5
      %v1284 = vmul.f32 %v1268, 0.5
      %v1285 = vmul.f32 %v1269, 0.5
      %v1286 = vmul.f32 %v1270, 0.5
      %v1287 = vmul.f32 %v1271, 0.5
      %v1288 = vmul.f32 %v1272, 0.5
      %v1289 = vmul.f32 %v1273, 0.5
      %v1290 = vmul.f32 %v1274, 0.5
      %v1291 = vld [vmem:[%s237] sm:$0xff]
      %v1292 = vld [vmem:[%s237 + $0x8] sm:$0xff]
      %v1293 = vld [vmem:[%s237 + $0x10] sm:$0xff]
      %v1294 = vld [vmem:[%s237 + $0x18] sm:$0xff]
      %v1295 = vld [vmem:[%s237 + $0x20] sm:$0xff]
      %v1296 = vld [vmem:[%s237 + $0x28] sm:$0xff]
      %v1297 = vld [vmem:[%s237 + $0x30] sm:$0xff]
      %v1298 = vld [vmem:[%s237 + $0x38] sm:$0xff]
      %v1299 = vld [vmem:[%s237 + $0x40] sm:$0xff]
      %v1300 = vld [vmem:[%s237 + $0x48] sm:$0xff]
      %v1301 = vld [vmem:[%s237 + $0x50] sm:$0xff]
      %v1302 = vld [vmem:[%s237 + $0x58] sm:$0xff]
      %v1303 = vld [vmem:[%s237 + $0x60] sm:$0xff]
      %v1304 = vld [vmem:[%s237 + $0x68] sm:$0xff]
      %v1305 = vld [vmem:[%s237 + $0x70] sm:$0xff]
      %v1306 = vld [vmem:[%s237 + $0x78] sm:$0xff]
      %vm1307 = vcmp.lt.f32.partialorder %v1291, %v1275
      %vm1308 = vcmp.lt.f32.partialorder %v1292, %v1276
      %vm1309 = vcmp.lt.f32.partialorder %v1293, %v1277
      %vm1310 = vcmp.lt.f32.partialorder %v1294, %v1278
      %vm1311 = vcmp.lt.f32.partialorder %v1295, %v1279
      %vm1312 = vcmp.lt.f32.partialorder %v1296, %v1280
      %vm1313 = vcmp.lt.f32.partialorder %v1297, %v1281
      %vm1314 = vcmp.lt.f32.partialorder %v1298, %v1282
      %vm1315 = vcmp.lt.f32.partialorder %v1299, %v1283
      %vm1316 = vcmp.lt.f32.partialorder %v1300, %v1284
      %vm1317 = vcmp.lt.f32.partialorder %v1301, %v1285
      %vm1318 = vcmp.lt.f32.partialorder %v1302, %v1286
      %vm1319 = vcmp.lt.f32.partialorder %v1303, %v1287
      %vm1320 = vcmp.lt.f32.partialorder %v1304, %v1288
      %vm1321 = vcmp.lt.f32.partialorder %v1305, %v1289
      %vm1322 = vcmp.lt.f32.partialorder %v1306, %v1290
      %v1323 = vsel %vm1307, 1, 0
      %v1324 = vsel %vm1308, 1, 0
      %v1325 = vsel %vm1309, 1, 0
      %v1326 = vsel %vm1310, 1, 0
      %v1327 = vsel %vm1311, 1, 0
      %v1328 = vsel %vm1312, 1, 0
      %v1329 = vsel %vm1313, 1, 0
      %v1330 = vsel %vm1314, 1, 0
      %v1331 = vsel %vm1315, 1, 0
      %v1332 = vsel %vm1316, 1, 0
      %v1333 = vsel %vm1317, 1, 0
      %v1334 = vsel %vm1318, 1, 0
      %v1335 = vsel %vm1319, 1, 0
      %v1336 = vsel %vm1320, 1, 0
      %v1337 = vsel %vm1321, 1, 0
      %v1338 = vsel %vm1322, 1, 0
      %v1339 = vcvt.s32.f32 %v1323
      %v1340 = vcvt.s32.f32 %v1324
      %v1341 = vcvt.s32.f32 %v1325
      %v1342 = vcvt.s32.f32 %v1326
      %v1343 = vcvt.s32.f32 %v1327
      %v1344 = vcvt.s32.f32 %v1328
      %v1345 = vcvt.s32.f32 %v1329
      %v1346 = vcvt.s32.f32 %v1330
      %v1347 = vcvt.s32.f32 %v1331
      %v1348 = vcvt.s32.f32 %v1332
      %v1349 = vcvt.s32.f32 %v1333
      %v1350 = vcvt.s32.f32 %v1334
      %v1351 = vcvt.s32.f32 %v1335
      %v1352 = vcvt.s32.f32 %v1336
      %v1353 = vcvt.s32.f32 %v1337
      %v1354 = vcvt.s32.f32 %v1338
      %1355 = vst.msk [vmem:[%s243] sm:$0xff] %vm586, %v1339
      %1356 = vst.msk [vmem:[%s243 + $0x8] sm:$0xff] %vm586, %v1340
      %1357 = vst.msk [vmem:[%s243 + $0x10] sm:$0xff] %vm586, %v1341
      %1358 = vst.msk [vmem:[%s243 + $0x18] sm:$0xff] %vm586, %v1342
      %1359 = vst.msk [vmem:[%s243 + $0x20] sm:$0xff] %vm586, %v1343
      %1360 = vst.msk [vmem:[%s243 + $0x28] sm:$0xff] %vm586, %v1344
      %1361 = vst.msk [vmem:[%s243 + $0x30] sm:$0xff] %vm586, %v1345
      %1362 = vst.msk [vmem:[%s243 + $0x38] sm:$0xff] %vm586, %v1346
      %1363 = vst.msk [vmem:[%s243 + $0x40] sm:$0xff] %vm586, %v1347
      %1364 = vst.msk [vmem:[%s243 + $0x48] sm:$0xff] %vm586, %v1348
      %1365 = vst.msk [vmem:[%s243 + $0x50] sm:$0xff] %vm586, %v1349
      %1366 = vst.msk [vmem:[%s243 + $0x58] sm:$0xff] %vm586, %v1350
      %1367 = vst.msk [vmem:[%s243 + $0x60] sm:$0xff] %vm586, %v1351
      %1368 = vst.msk [vmem:[%s243 + $0x68] sm:$0xff] %vm586, %v1352
      %1369 = vst.msk [vmem:[%s243 + $0x70] sm:$0xff] %vm586, %v1353
      %1370 = vst.msk [vmem:[%s243 + $0x78] sm:$0xff] %vm586, %v1354
      %1387 = vrot.lane.b32.xlu0 %v1275, 8
      %v1388 = vpop.permute.xlu0 %1387
      %1389 = vrot.lane.b32.xlu0 %v1276, 8
      %v1390 = vpop.permute.xlu0 %1389
      %1391 = vrot.lane.b32.xlu0 %v1277, 8
      %v1392 = vpop.permute.xlu0 %1391
      %1393 = vrot.lane.b32.xlu0 %v1278, 8
      %v1394 = vpop.permute.xlu0 %1393
      %1395 = vrot.lane.b32.xlu0 %v1279, 8
      %v1396 = vpop.permute.xlu0 %1395
      %1397 = vrot.lane.b32.xlu0 %v1280, 8
      %v1398 = vpop.permute.xlu0 %1397
      %1399 = vrot.lane.b32.xlu0 %v1281, 8
      %v1400 = vpop.permute.xlu0 %1399
      %1401 = vrot.lane.b32.xlu0 %v1282, 8
      %v1402 = vpop.permute.xlu0 %1401
      %1403 = vrot.lane.b32.xlu0 %v1283, 8
      %v1404 = vpop.permute.xlu0 %1403
      %1405 = vrot.lane.b32.xlu0 %v1284, 8
      %v1406 = vpop.permute.xlu0 %1405
      %1407 = vrot.lane.b32.xlu0 %v1285, 8
      %v1408 = vpop.permute.xlu0 %1407
      %1409 = vrot.lane.b32.xlu0 %v1286, 8
      %v1410 = vpop.permute.xlu0 %1409
      %1411 = vrot.lane.b32.xlu0 %v1287, 8
      %v1412 = vpop.permute.xlu0 %1411
      %1413 = vrot.lane.b32.xlu0 %v1288, 8
      %v1414 = vpop.permute.xlu0 %1413
      %1415 = vrot.lane.b32.xlu0 %v1289, 8
      %v1416 = vpop.permute.xlu0 %1415
      %1417 = vrot.lane.b32.xlu0 %v1290, 8
      %v1418 = vpop.permute.xlu0 %1417
      %vm1435 = vcmask 130112
      %1436 = vst.msk [vmem:[%s243] sm:$0xff] %vm1435, %v1388
      %1437 = vst.msk [vmem:[%s243 + $0x8] sm:$0xff] %vm1435, %v1390
      %1438 = vst.msk [vmem:[%s243 + $0x10] sm:$0xff] %vm1435, %v1392
      %1439 = vst.msk [vmem:[%s243 + $0x18] sm:$0xff] %vm1435, %v1394
      %1440 = vst.msk [vmem:[%s243 + $0x20] sm:$0xff] %vm1435, %v1396
      %1441 = vst.msk [vmem:[%s243 + $0x28] sm:$0xff] %vm1435, %v1398
      %1442 = vst.msk [vmem:[%s243 + $0x30] sm:$0xff] %vm1435, %v1400
      %1443 = vst.msk [vmem:[%s243 + $0x38] sm:$0xff] %vm1435, %v1402
      %1444 = vst.msk [vmem:[%s243 + $0x40] sm:$0xff] %vm1435, %v1404
      %1445 = vst.msk [vmem:[%s243 + $0x48] sm:$0xff] %vm1435, %v1406
      %1446 = vst.msk [vmem:[%s243 + $0x50] sm:$0xff] %vm1435, %v1408
      %1447 = vst.msk [vmem:[%s243 + $0x58] sm:$0xff] %vm1435, %v1410
      %1448 = vst.msk [vmem:[%s243 + $0x60] sm:$0xff] %vm1435, %v1412
      %1449 = vst.msk [vmem:[%s243 + $0x68] sm:$0xff] %vm1435, %v1414
      %1450 = vst.msk [vmem:[%s243 + $0x70] sm:$0xff] %vm1435, %v1416
      %1451 = vst.msk [vmem:[%s243 + $0x78] sm:$0xff] %vm1435, %v1418
      %s1452 = smul.u32 16, %s15
      %p1453 = scmp.lt.s32.totalorder %s1452, 31
      %s1454 = scalar_select %p1453, %s1452, 31
      %s1455 = smul.addr %s1454, 8
      %s1456 = scalar_lea.vmem %s4, %s1455
      // Predicated region
      $region37: #{tpu_custom_call.1} parent=35 // pred_check
        %p1457 = pneg %p132
      $region38: #{tpu_custom_call.1} parent=35 // pred_check_branch
        %1459 = sbr.rel (%p1457) target = $region40
      $region39: #{tpu_custom_call.1} parent=35 // pred_region
        %s1460 = smul.u32 16, %s15
      $region40: #{tpu_custom_call.1} parent=35 // pred_fallthru
        _
    $region36: #{tpu_custom_call.1} parent=5 // pred_fallthru
      _
    %p1461 = scmp.le.s32.totalorder 2, %s10
    // Predicated region
    $region41: #{tpu_custom_call.1} parent=5 // pred_check
      %p1462 = pneg %p1461
    $region42: #{tpu_custom_call.1} parent=5 // pred_check_branch
      %1464 = sbr.rel (%p1462) target = $region44
    $region43: #{tpu_custom_call.1} parent=5 // pred_region
      %s1465 = ssub.s32 %s10, 2
      // Predicated region
      $region45: #{tpu_custom_call.1} parent=43 // pred_check
        %p1466 = pneg %p138
      $region46: #{tpu_custom_call.1} parent=43 // pred_check_branch
        %1468 = sbr.rel (%p1466) target = $region48
      $region47: #{tpu_custom_call.1} parent=43 // pred_region
        %s1469 = smul.u32 16, %s16
        %p1470 = scmp.lt.s32.totalorder %s1469, 31
        %s1471 = scalar_select %p1470, %s1469, 31
        %s1472 = smul.addr %s1471, 8
        %s1473 = scalar_lea.vmem %s4, %s1472
      $region48: #{tpu_custom_call.1} parent=43 // pred_fallthru
        _
    $region44: #{tpu_custom_call.1} parent=5 // pred_fallthru
      _
  $region6: #{tpu_custom_call.1} parent=0 // loop_footer
    %s14 = sadd.s32 1, %s10
  $region7: #{tpu_custom_call.1} parent=0 // loop_footer_branch
    %9 = sbr.rel target = $region3
  $region8: #{tpu_custom_call.1} parent=0 // loop_exit
    _

</llo_original>
